<compile_context>
chip_gen: v7x
topology: tpu7x:2x2x1
jax: 0.10.0
libtpu: 0.0.40
codegen_flags: <defaults>
</compile_context>

<pallas_src>
import functools

import jax
import jax.numpy as jnp
from jax import lax
from jax.experimental import pallas as pl
from jax.experimental.pallas import tpu as pltpu

DILATIONS = (1, 3, 9)   # the three ResidualUnits inside EncoderBlock
BN_EPS = 1e-5           # nn.BatchNorm1d default eps


def _encoder_block_kernel(x_ref, w_ref, b_ref, g_ref, beta_ref, o_ref,
                          h_ref, stk_ref, *, B, L, K):
    # x_ref / o_ref : (B, C, L)     activations, PyTorch NCL layout
    # w_ref         : (3, C, K*C)   bf16 conv weights, taps stacked on contraction dim
    # b/g/beta      : (3, C, 1)     f32 conv bias / BN affine params
    # h_ref         : (C, B*L) f32  persistent residual stream (VMEM scratch)
    # stk_ref       : (K*C, B*L) bf16 stacked conv taps (VMEM scratch)
    C = x_ref.shape[1]
    N = B * L
    inv_n = 1.0 / float(N)

    # Materialize the residual stream once: example bb -> lanes [bb*L, (bb+1)*L).
    for bb in range(B):
        h_ref[:, bb * L:(bb + 1) * L] = x_ref[bb].astype(jnp.float32)

    # Position within each example (hoisted out of all loops); used for the
    # causal zero-pad mask of every shifted tap.
    local_pos = lax.broadcasted_iota(jnp.int32, (1, N), 1) % L

    for layer, d in enumerate(DILATIONS):
        h = h_ref[...]                                          # (C, B*L) f32

        # ---- CausalConv1d(kernel_size=K, dilation=d), left pad d*(K-1) ----
        # Write every tap straight into the bf16 stacked buffer; one roll +
        # one masked select per tap on the full-width tile.
        for j in range(K):
            s = (K - 1 - j) * d                                 # static right shift
            if s == 0:
                tap = h
            else:
                rolled = pltpu.roll(h, shift=s, axis=1)         # out[t] = h[t - s] (circular)
                # wrapped values from the neighbouring example land only at
                # local_pos < s and are zeroed == causal left padding
                tap = jnp.where(local_pos >= s, rolled, 0.0)
            stk_ref[j * C:(j + 1) * C, :] = tap.astype(jnp.bfloat16)

        # One MXU matmul per ResidualUnit: (C, K*C) @ (K*C, B*L) -> (C, B*L) f32
        acc = jnp.dot(w_ref[layer], stk_ref[...],
                      preferred_element_type=jnp.float32)
        acc = acc + b_ref[layer]                                # (C, B*L) + (C, 1)

        # ---- BatchNorm1d (training-mode, two-pass biased variance) ----
        mu = jnp.sum(acc, axis=1, keepdims=True) * inv_n        # (C, 1)
        centered = acc - mu
        var = jnp.sum(centered * centered, axis=1, keepdims=True) * inv_n
        scale = g_ref[layer] * lax.rsqrt(var + BN_EPS)          # (C, 1)
        y = centered * scale + beta_ref[layer]

        # ---- ReLU + residual ----
        h_ref[...] = h + jnp.maximum(y, 0.0)

    for bb in range(B):
        o_ref[bb] = h_ref[:, bb * L:(bb + 1) * L].astype(o_ref.dtype)


@functools.lru_cache(maxsize=None)
def _default_vmem_limit_bytes():
    """Per-generation scoped-VMEM limit: ~3/4 of physical, capped at 100 MiB."""
    try:
        cap = int(pltpu.get_tpu_info().vmem_capacity_bytes)
    except Exception:
        cap = 64 * 1024 * 1024          # conservative fallback (v7x-sized)
    return min(cap * 3 // 4, 100 * 1024 * 1024)


@jax.jit
def encoder_block_forward(x, w, b, g, beta):
    """x: (B, C, L) NCL like PyTorch.  w: (3, K, C, C), b/g/beta: (3, C, 1)."""
    B, C, L = x.shape
    K = w.shape[1]
    assert (K - 1) * max(DILATIONS) < L, "causal padding must be shorter than L"

    # Stack the K taps along the contraction dim: (3, K, C_out, C_in) -> (3, C_out, K*C_in)
    # and pre-cast weights to bf16 for the MXU (accumulation stays f32 in-kernel).
    w_stk = jnp.transpose(w, (0, 2, 1, 3)).reshape(w.shape[0], C, K * C)
    w_stk = w_stk.astype(jnp.bfloat16)

    kernel = functools.partial(_encoder_block_kernel, B=B, L=L, K=K)

    return pl.pallas_call(
        kernel,
        out_shape=jax.ShapeDtypeStruct((B, C, L), x.dtype),
        in_specs=[pl.BlockSpec(memory_space=pltpu.MemorySpace.VMEM)] * 5,
        out_specs=pl.BlockSpec(memory_space=pltpu.MemorySpace.VMEM),
        scratch_shapes=[
            pltpu.VMEM((C, B * L), jnp.float32),        # residual stream h
            pltpu.VMEM((K * C, B * L), jnp.bfloat16),   # stacked conv taps
        ],
        input_output_aliases={0: 0},   # x is fully read into VMEM before any output write
        compiler_params=pltpu.CompilerParams(
            vmem_limit_bytes=_default_vmem_limit_bytes()),
    )(x, w_stk, b, g, beta)


def encoder_block_reference(x, w, b, g, beta, matmul_dtype=jnp.float32):
    """Pure-JAX reference of the PyTorch EncoderBlock.forward semantics.

    matmul_dtype lets us mirror the kernel's bf16 MXU operands (f32 accumulation)
    for a tight numerical check, while matmul_dtype=float32 is full-precision
    PyTorch semantics.
    """
    K = w.shape[1]
    h = x.astype(jnp.float32)
    B, C, L = h.shape
    for layer, d in enumerate(DILATIONS):
        acc = jnp.zeros_like(h)
        for j in range(K):
            s = (K - 1 - j) * d
            x_tap = jnp.pad(h, ((0, 0), (0, 0), (s, 0)))[:, :, :L]
            acc = acc + jnp.einsum(
                "oc,bcl->bol",
                w[layer, j].astype(matmul_dtype),
                x_tap.astype(matmul_dtype),
                preferred_element_type=jnp.float32)
        acc = acc + b[layer][None]
        mu = jnp.mean(acc, axis=(0, 2), keepdims=True)
        var = jnp.mean((acc - mu) ** 2, axis=(0, 2), keepdims=True)
        y = g[layer][None] * (acc - mu) * lax.rsqrt(var + BN_EPS) + beta[layer][None]
        h = h + jnp.maximum(y, 0.0)
    return h.astype(x.dtype)


if __name__ == "__main__":
    B, C, L, K = 2, 16, 128, 3   # out_channels=16, kernel_size=3

    key = jax.random.PRNGKey(0)
    kx, kw, kb = jax.random.split(key, 3)
    x = jax.random.normal(kx, (B, C, L), dtype=jnp.float32)

    # Deterministic synthetic parameters (CausalConv1d weight (C_out, C_in, K)
    # stored as (layer, tap, C_out, C_in); BatchNorm1d affine defaults).
    w = 0.1 * jax.random.normal(kw, (len(DILATIONS), K, C, C), dtype=jnp.float32)
    b = 0.1 * jax.random.normal(kb, (len(DILATIONS), C, 1), dtype=jnp.float32)
    g = jnp.ones((len(DILATIONS), C, 1), dtype=jnp.float32)      # BN weight
    beta = jnp.zeros((len(DILATIONS), C, 1), dtype=jnp.float32)  # BN bias

    out = jax.block_until_ready(encoder_block_forward(x, w, b, g, beta))
    assert out.shape == (B, C, L)

    # Tight check: reference with the same bf16 matmul operands as the kernel.
    ref_bf16 = jax.block_until_ready(
        encoder_block_reference(x, w, b, g, beta, matmul_dtype=jnp.bfloat16))
    if not jnp.allclose(out, ref_bf16, atol=5e-3, rtol=5e-3):
        raise AssertionError(
            f"mismatch vs bf16-matmul reference, "
            f"max abs err = {jnp.max(jnp.abs(out - ref_bf16))}")

    # Loose check: full-precision PyTorch-semantics reference (tolerance covers
    # the intentional bf16 rounding of the MXU operands).
    ref_f32 = jax.block_until_ready(
        encoder_block_reference(x, w, b, g, beta, matmul_dtype=jnp.float32))
    if not jnp.allclose(out, ref_f32, atol=5e-2, rtol=5e-2):
        raise AssertionError(
            f"mismatch vs f32 reference, "
            f"max abs err = {jnp.max(jnp.abs(out - ref_f32))}")

    print("KERNEL_OK")
</pallas_src>

<mosaic_0001>
module attributes {stable_mosaic.version = 11 : i64} {
  func.func @_encoder_block_kernel(%arg0: memref<2x16x128xf32, #tpu.memory_space<vmem>>, %arg1: memref<3x16x48xbf16, #tpu.memory_space<vmem>>, %arg2: memref<3x16x1xf32, #tpu.memory_space<vmem>>, %arg3: memref<3x16x1xf32, #tpu.memory_space<vmem>>, %arg4: memref<3x16x1xf32, #tpu.memory_space<vmem>>, %arg5: memref<2x16x128xf32, #tpu.memory_space<vmem>>, %arg6: memref<16x256xf32, #tpu.memory_space<vmem>>, %arg7: memref<48x256xbf16, #tpu.memory_space<vmem>>) attributes {dimension_semantics = [], scalar_prefetch = 0 : i64, scratch_operands = 2 : i64, tpu.core_type = #tpu.core_type<tc>} {
    %c0 = arith.constant 0 : index
    %c0_0 = arith.constant 0 : index
    %c0_1 = arith.constant 0 : index
    %0 = vector.load %arg0[%c0, %c0_0, %c0_1] : memref<2x16x128xf32, #tpu.memory_space<vmem>>, vector<1x16x128xf32>
    %1 = vector.shape_cast %0 : vector<1x16x128xf32> to vector<16x128xf32>
    %c0_2 = arith.constant 0 : index
    %c0_3 = arith.constant 0 : index
    %2 = vector.load %arg6[%c0_2, %c0_3] : memref<16x256xf32, #tpu.memory_space<vmem>>, vector<16x128xf32>
    tpu.vector_store %arg6[%c0_2, %c0_3], %1 {strides = array<i32>} : memref<16x256xf32, #tpu.memory_space<vmem>>, vector<16x128xf32>,
    %c1 = arith.constant 1 : index
    %c0_4 = arith.constant 0 : index
    %c0_5 = arith.constant 0 : index
    %3 = vector.load %arg0[%c1, %c0_4, %c0_5] : memref<2x16x128xf32, #tpu.memory_space<vmem>>, vector<1x16x128xf32>
    %4 = vector.shape_cast %3 : vector<1x16x128xf32> to vector<16x128xf32>
    %c0_6 = arith.constant 0 : index
    %c128 = arith.constant 128 : index
    %5 = vector.load %arg6[%c0_6, %c128] : memref<16x256xf32, #tpu.memory_space<vmem>>, vector<16x128xf32>
    tpu.vector_store %arg6[%c0_6, %c128], %4 {strides = array<i32>} : memref<16x256xf32, #tpu.memory_space<vmem>>, vector<16x128xf32>,
    %6 = tpu.iota {dimensions = array<i32: 1>} : vector<1x256xi32>
    %c128_i32 = arith.constant 128 : i32
    %c0_i32 = arith.constant 0 : i32
    %7 = arith.cmpi eq, %c128_i32, %c0_i32 : i32
    %c1_i32 = arith.constant 1 : i32
    %8 = arith.select %7, %c1_i32, %c128_i32 : i32
    %9 = vector.broadcast %8 : i32 to vector<1x256xi32>
    %10 = arith.remsi %6, %9 : vector<1x256xi32>
    %c0_i32_7 = arith.constant 0 : i32
    %11 = vector.broadcast %c0_i32_7 : i32 to vector<1x256xi32>
    %12 = arith.cmpi ne, %10, %11 : vector<1x256xi32>
    %c0_i32_8 = arith.constant 0 : i32
    %13 = vector.broadcast %c0_i32_8 : i32 to vector<1x256xi32>
    %14 = arith.cmpi slt, %10, %13 : vector<1x256xi32>
    %c0_i32_9 = arith.constant 0 : i32
    %15 = arith.cmpi slt, %8, %c0_i32_9 : i32
    %16 = vector.broadcast %15 : i1 to vector<1x256xi1>
    %17 = vector.broadcast %16 : vector<1x256xi1> to vector<1x256xi1>
    %18 = arith.xori %14, %17 : vector<1x256xi1>
    %19 = arith.andi %18, %12 : vector<1x256xi1>
    %20 = vector.broadcast %8 : i32 to vector<1x256xi32>
    %21 = arith.addi %10, %20 : vector<1x256xi32>
    %22 = arith.select %19, %21, %10 : vector<1x256xi1>, vector<1x256xi32>
    %c0_10 = arith.constant 0 : index
    %c0_11 = arith.constant 0 : index
    %23 = vector.load %arg6[%c0_10, %c0_11] : memref<16x256xf32, #tpu.memory_space<vmem>>, vector<16x256xf32>
    %c2_i32 = arith.constant 2 : i32
    %24 = tpu.dynamic_rotate %23 by %c2_i32 dim 1 : vector<16x256xf32>, i32 -> vector<16x256xf32>
    %c2_i32_12 = arith.constant 2 : i32
    %25 = vector.broadcast %c2_i32_12 : i32 to vector<1x256xi32>
    %26 = arith.cmpi sge, %22, %25 : vector<1x256xi32>
    %cst = arith.constant 0.000000e+00 : f32
    %27 = vector.shape_cast %26 : vector<1x256xi1> to vector<1x256xi1>
    %28 = vector.broadcast %27 : vector<1x256xi1> to vector<16x256xi1>
    %29 = vector.broadcast %cst : f32 to vector<16x256xf32>
    %30 = arith.select %28, %24, %29 : vector<16x256xi1>, vector<16x256xf32>
    %31 = arith.truncf %30 : vector<16x256xf32> to vector<16x256xbf16>
    %c0_13 = arith.constant 0 : index
    %c0_14 = arith.constant 0 : index
    %32 = vector.load %arg7[%c0_13, %c0_14] : memref<48x256xbf16, #tpu.memory_space<vmem>>, vector<16x256xbf16>
    tpu.vector_store %arg7[%c0_13, %c0_14], %31 {strides = array<i32>} : memref<48x256xbf16, #tpu.memory_space<vmem>>, vector<16x256xbf16>,
    %c1_i32_15 = arith.constant 1 : i32
    %33 = tpu.dynamic_rotate %23 by %c1_i32_15 dim 1 : vector<16x256xf32>, i32 -> vector<16x256xf32>
    %c1_i32_16 = arith.constant 1 : i32
    %34 = vector.broadcast %c1_i32_16 : i32 to vector<1x256xi32>
    %35 = arith.cmpi sge, %22, %34 : vector<1x256xi32>
    %cst_17 = arith.constant 0.000000e+00 : f32
    %36 = vector.shape_cast %35 : vector<1x256xi1> to vector<1x256xi1>
    %37 = vector.broadcast %36 : vector<1x256xi1> to vector<16x256xi1>
    %38 = vector.broadcast %cst_17 : f32 to vector<16x256xf32>
    %39 = arith.select %37, %33, %38 : vector<16x256xi1>, vector<16x256xf32>
    %40 = arith.truncf %39 : vector<16x256xf32> to vector<16x256xbf16>
    %c16 = arith.constant 16 : index
    %c0_18 = arith.constant 0 : index
    %41 = vector.load %arg7[%c16, %c0_18] : memref<48x256xbf16, #tpu.memory_space<vmem>>, vector<16x256xbf16>
    tpu.vector_store %arg7[%c16, %c0_18], %40 {strides = array<i32>} : memref<48x256xbf16, #tpu.memory_space<vmem>>, vector<16x256xbf16>,
    %42 = arith.truncf %23 : vector<16x256xf32> to vector<16x256xbf16>
    %c32 = arith.constant 32 : index
    %c0_19 = arith.constant 0 : index
    %43 = vector.load %arg7[%c32, %c0_19] : memref<48x256xbf16, #tpu.memory_space<vmem>>, vector<16x256xbf16>
    tpu.vector_store %arg7[%c32, %c0_19], %42 {strides = array<i32>} : memref<48x256xbf16, #tpu.memory_space<vmem>>, vector<16x256xbf16>,
    %c0_20 = arith.constant 0 : index
    %c0_21 = arith.constant 0 : index
    %c0_22 = arith.constant 0 : index
    %44 = vector.load %arg1[%c0_20, %c0_21, %c0_22] : memref<3x16x48xbf16, #tpu.memory_space<vmem>>, vector<1x16x48xbf16>
    %45 = vector.shape_cast %44 : vector<1x16x48xbf16> to vector<16x48xbf16>
    %c0_23 = arith.constant 0 : index
    %c0_24 = arith.constant 0 : index
    %46 = vector.load %arg7[%c0_23, %c0_24] : memref<48x256xbf16, #tpu.memory_space<vmem>>, vector<48x256xbf16>
    %cst_25 = arith.constant dense<0.000000e+00> : vector<16x256xf32>
    %47 = tpu.matmul %45, %46, %cst_25 {dimension_numbers = #tpu.dot_dimension_numbers<[1], [0], [0], [1], [0, 0, 1, 1], [], []>} : vector<16x48xbf16>, vector<48x256xbf16>, vector<16x256xf32> -> vector<16x256xf32>
    %c0_26 = arith.constant 0 : index
    %c0_27 = arith.constant 0 : index
    %c0_28 = arith.constant 0 : index
    %48 = vector.load %arg2[%c0_26, %c0_27, %c0_28] : memref<3x16x1xf32, #tpu.memory_space<vmem>>, vector<1x16x1xf32>
    %49 = vector.shape_cast %48 : vector<1x16x1xf32> to vector<16x1xf32>
    %50 = vector.broadcast %49 : vector<16x1xf32> to vector<16x256xf32>
    %51 = arith.addf %47, %50 : vector<16x256xf32>
    %cst_29 = arith.constant dense<0.000000e+00> : vector<16xf32>
    %52 = vector.multi_reduction <add>, %51, %cst_29 [1] : vector<16x256xf32> to vector<16xf32>
    %53 = vector.shape_cast %52 : vector<16xf32> to vector<16x1xf32>
    %cst_30 = arith.constant 3.906250e-03 : f32
    %54 = vector.broadcast %cst_30 : f32 to vector<16x1xf32>
    %55 = arith.mulf %53, %54 : vector<16x1xf32>
    %56 = vector.broadcast %55 : vector<16x1xf32> to vector<16x256xf32>
    %57 = arith.subf %51, %56 : vector<16x256xf32>
    %58 = arith.mulf %57, %57 : vector<16x256xf32>
    %cst_31 = arith.constant dense<0.000000e+00> : vector<16xf32>
    %59 = vector.multi_reduction <add>, %58, %cst_31 [1] : vector<16x256xf32> to vector<16xf32>
    %60 = vector.shape_cast %59 : vector<16xf32> to vector<16x1xf32>
    %cst_32 = arith.constant 3.906250e-03 : f32
    %61 = vector.broadcast %cst_32 : f32 to vector<16x1xf32>
    %62 = arith.mulf %60, %61 : vector<16x1xf32>
    %c0_33 = arith.constant 0 : index
    %c0_34 = arith.constant 0 : index
    %c0_35 = arith.constant 0 : index
    %63 = vector.load %arg3[%c0_33, %c0_34, %c0_35] : memref<3x16x1xf32, #tpu.memory_space<vmem>>, vector<1x16x1xf32>
    %64 = vector.shape_cast %63 : vector<1x16x1xf32> to vector<16x1xf32>
    %cst_36 = arith.constant 9.99999974E-6 : f32
    %65 = vector.broadcast %cst_36 : f32 to vector<16x1xf32>
    %66 = arith.addf %62, %65 : vector<16x1xf32>
    %67 = math.rsqrt %66 : vector<16x1xf32>
    %68 = arith.mulf %64, %67 : vector<16x1xf32>
    %69 = vector.broadcast %68 : vector<16x1xf32> to vector<16x256xf32>
    %70 = arith.mulf %57, %69 : vector<16x256xf32>
    %c0_37 = arith.constant 0 : index
    %c0_38 = arith.constant 0 : index
    %c0_39 = arith.constant 0 : index
    %71 = vector.load %arg4[%c0_37, %c0_38, %c0_39] : memref<3x16x1xf32, #tpu.memory_space<vmem>>, vector<1x16x1xf32>
    %72 = vector.shape_cast %71 : vector<1x16x1xf32> to vector<16x1xf32>
    %73 = vector.broadcast %72 : vector<16x1xf32> to vector<16x256xf32>
    %74 = arith.addf %70, %73 : vector<16x256xf32>
    %cst_40 = arith.constant 0.000000e+00 : f32
    %75 = vector.broadcast %cst_40 : f32 to vector<16x256xf32>
    %76 = arith.maximumf %74, %75 : vector<16x256xf32>
    %77 = arith.addf %23, %76 : vector<16x256xf32>
    %c0_41 = arith.constant 0 : index
    %c0_42 = arith.constant 0 : index
    %78 = vector.load %arg6[%c0_41, %c0_42] : memref<16x256xf32, #tpu.memory_space<vmem>>, vector<16x256xf32>
    tpu.vector_store %arg6[%c0_41, %c0_42], %77 {strides = array<i32>} : memref<16x256xf32, #tpu.memory_space<vmem>>, vector<16x256xf32>,
    %c0_43 = arith.constant 0 : index
    %c0_44 = arith.constant 0 : index
    %79 = vector.load %arg6[%c0_43, %c0_44] : memref<16x256xf32, #tpu.memory_space<vmem>>, vector<16x256xf32>
    %c6_i32 = arith.constant 6 : i32
    %80 = tpu.dynamic_rotate %79 by %c6_i32 dim 1 : vector<16x256xf32>, i32 -> vector<16x256xf32>
    %c6_i32_45 = arith.constant 6 : i32
    %81 = vector.broadcast %c6_i32_45 : i32 to vector<1x256xi32>
    %82 = arith.cmpi sge, %22, %81 : vector<1x256xi32>
    %cst_46 = arith.constant 0.000000e+00 : f32
    %83 = vector.shape_cast %82 : vector<1x256xi1> to vector<1x256xi1>
    %84 = vector.broadcast %83 : vector<1x256xi1> to vector<16x256xi1>
    %85 = vector.broadcast %cst_46 : f32 to vector<16x256xf32>
    %86 = arith.select %84, %80, %85 : vector<16x256xi1>, vector<16x256xf32>
    %87 = arith.truncf %86 : vector<16x256xf32> to vector<16x256xbf16>
    %c0_47 = arith.constant 0 : index
    %c0_48 = arith.constant 0 : index
    %88 = vector.load %arg7[%c0_47, %c0_48] : memref<48x256xbf16, #tpu.memory_space<vmem>>, vector<16x256xbf16>
    tpu.vector_store %arg7[%c0_47, %c0_48], %87 {strides = array<i32>} : memref<48x256xbf16, #tpu.memory_space<vmem>>, vector<16x256xbf16>,
    %c3_i32 = arith.constant 3 : i32
    %89 = tpu.dynamic_rotate %79 by %c3_i32 dim 1 : vector<16x256xf32>, i32 -> vector<16x256xf32>
    %c3_i32_49 = arith.constant 3 : i32
    %90 = vector.broadcast %c3_i32_49 : i32 to vector<1x256xi32>
    %91 = arith.cmpi sge, %22, %90 : vector<1x256xi32>
    %cst_50 = arith.constant 0.000000e+00 : f32
    %92 = vector.shape_cast %91 : vector<1x256xi1> to vector<1x256xi1>
    %93 = vector.broadcast %92 : vector<1x256xi1> to vector<16x256xi1>
    %94 = vector.broadcast %cst_50 : f32 to vector<16x256xf32>
    %95 = arith.select %93, %89, %94 : vector<16x256xi1>, vector<16x256xf32>
    %96 = arith.truncf %95 : vector<16x256xf32> to vector<16x256xbf16>
    %c16_51 = arith.constant 16 : index
    %c0_52 = arith.constant 0 : index
    %97 = vector.load %arg7[%c16_51, %c0_52] : memref<48x256xbf16, #tpu.memory_space<vmem>>, vector<16x256xbf16>
    tpu.vector_store %arg7[%c16_51, %c0_52], %96 {strides = array<i32>} : memref<48x256xbf16, #tpu.memory_space<vmem>>, vector<16x256xbf16>,
    %98 = arith.truncf %79 : vector<16x256xf32> to vector<16x256xbf16>
    %c32_53 = arith.constant 32 : index
    %c0_54 = arith.constant 0 : index
    %99 = vector.load %arg7[%c32_53, %c0_54] : memref<48x256xbf16, #tpu.memory_space<vmem>>, vector<16x256xbf16>
    tpu.vector_store %arg7[%c32_53, %c0_54], %98 {strides = array<i32>} : memref<48x256xbf16, #tpu.memory_space<vmem>>, vector<16x256xbf16>,
    %c1_55 = arith.constant 1 : index
    %c0_56 = arith.constant 0 : index
    %c0_57 = arith.constant 0 : index
    %100 = vector.load %arg1[%c1_55, %c0_56, %c0_57] : memref<3x16x48xbf16, #tpu.memory_space<vmem>>, vector<1x16x48xbf16>
    %101 = vector.shape_cast %100 : vector<1x16x48xbf16> to vector<16x48xbf16>
    %c0_58 = arith.constant 0 : index
    %c0_59 = arith.constant 0 : index
    %102 = vector.load %arg7[%c0_58, %c0_59] : memref<48x256xbf16, #tpu.memory_space<vmem>>, vector<48x256xbf16>
    %cst_60 = arith.constant dense<0.000000e+00> : vector<16x256xf32>
    %103 = tpu.matmul %101, %102, %cst_60 {dimension_numbers = #tpu.dot_dimension_numbers<[1], [0], [0], [1], [0, 0, 1, 1], [], []>} : vector<16x48xbf16>, vector<48x256xbf16>, vector<16x256xf32> -> vector<16x256xf32>
    %c1_61 = arith.constant 1 : index
    %c0_62 = arith.constant 0 : index
    %c0_63 = arith.constant 0 : index
    %104 = vector.load %arg2[%c1_61, %c0_62, %c0_63] : memref<3x16x1xf32, #tpu.memory_space<vmem>>, vector<1x16x1xf32>
    %105 = vector.shape_cast %104 : vector<1x16x1xf32> to vector<16x1xf32>
    %106 = vector.broadcast %105 : vector<16x1xf32> to vector<16x256xf32>
    %107 = arith.addf %103, %106 : vector<16x256xf32>
    %cst_64 = arith.constant dense<0.000000e+00> : vector<16xf32>
    %108 = vector.multi_reduction <add>, %107, %cst_64 [1] : vector<16x256xf32> to vector<16xf32>
    %109 = vector.shape_cast %108 : vector<16xf32> to vector<16x1xf32>
    %cst_65 = arith.constant 3.906250e-03 : f32
    %110 = vector.broadcast %cst_65 : f32 to vector<16x1xf32>
    %111 = arith.mulf %109, %110 : vector<16x1xf32>
    %112 = vector.broadcast %111 : vector<16x1xf32> to vector<16x256xf32>
    %113 = arith.subf %107, %112 : vector<16x256xf32>
    %114 = arith.mulf %113, %113 : vector<16x256xf32>
    %cst_66 = arith.constant dense<0.000000e+00> : vector<16xf32>
    %115 = vector.multi_reduction <add>, %114, %cst_66 [1] : vector<16x256xf32> to vector<16xf32>
    %116 = vector.shape_cast %115 : vector<16xf32> to vector<16x1xf32>
    %cst_67 = arith.constant 3.906250e-03 : f32
    %117 = vector.broadcast %cst_67 : f32 to vector<16x1xf32>
    %118 = arith.mulf %116, %117 : vector<16x1xf32>
    %c1_68 = arith.constant 1 : index
    %c0_69 = arith.constant 0 : index
    %c0_70 = arith.constant 0 : index
    %119 = vector.load %arg3[%c1_68, %c0_69, %c0_70] : memref<3x16x1xf32, #tpu.memory_space<vmem>>, vector<1x16x1xf32>
    %120 = vector.shape_cast %119 : vector<1x16x1xf32> to vector<16x1xf32>
    %cst_71 = arith.constant 9.99999974E-6 : f32
    %121 = vector.broadcast %cst_71 : f32 to vector<16x1xf32>
    %122 = arith.addf %118, %121 : vector<16x1xf32>
    %123 = math.rsqrt %122 : vector<16x1xf32>
    %124 = arith.mulf %120, %123 : vector<16x1xf32>
    %125 = vector.broadcast %124 : vector<16x1xf32> to vector<16x256xf32>
    %126 = arith.mulf %113, %125 : vector<16x256xf32>
    %c1_72 = arith.constant 1 : index
    %c0_73 = arith.constant 0 : index
    %c0_74 = arith.constant 0 : index
    %127 = vector.load %arg4[%c1_72, %c0_73, %c0_74] : memref<3x16x1xf32, #tpu.memory_space<vmem>>, vector<1x16x1xf32>
    %128 = vector.shape_cast %127 : vector<1x16x1xf32> to vector<16x1xf32>
    %129 = vector.broadcast %128 : vector<16x1xf32> to vector<16x256xf32>
    %130 = arith.addf %126, %129 : vector<16x256xf32>
    %cst_75 = arith.constant 0.000000e+00 : f32
    %131 = vector.broadcast %cst_75 : f32 to vector<16x256xf32>
    %132 = arith.maximumf %130, %131 : vector<16x256xf32>
    %133 = arith.addf %79, %132 : vector<16x256xf32>
    %c0_76 = arith.constant 0 : index
    %c0_77 = arith.constant 0 : index
    %134 = vector.load %arg6[%c0_76, %c0_77] : memref<16x256xf32, #tpu.memory_space<vmem>>, vector<16x256xf32>
    tpu.vector_store %arg6[%c0_76, %c0_77], %133 {strides = array<i32>} : memref<16x256xf32, #tpu.memory_space<vmem>>, vector<16x256xf32>,
    %c0_78 = arith.constant 0 : index
    %c0_79 = arith.constant 0 : index
    %135 = vector.load %arg6[%c0_78, %c0_79] : memref<16x256xf32, #tpu.memory_space<vmem>>, vector<16x256xf32>
    %c18_i32 = arith.constant 18 : i32
    %136 = tpu.dynamic_rotate %135 by %c18_i32 dim 1 : vector<16x256xf32>, i32 -> vector<16x256xf32>
    %c18_i32_80 = arith.constant 18 : i32
    %137 = vector.broadcast %c18_i32_80 : i32 to vector<1x256xi32>
    %138 = arith.cmpi sge, %22, %137 : vector<1x256xi32>
    %cst_81 = arith.constant 0.000000e+00 : f32
    %139 = vector.shape_cast %138 : vector<1x256xi1> to vector<1x256xi1>
    %140 = vector.broadcast %139 : vector<1x256xi1> to vector<16x256xi1>
    %141 = vector.broadcast %cst_81 : f32 to vector<16x256xf32>
    %142 = arith.select %140, %136, %141 : vector<16x256xi1>, vector<16x256xf32>
    %143 = arith.truncf %142 : vector<16x256xf32> to vector<16x256xbf16>
    %c0_82 = arith.constant 0 : index
    %c0_83 = arith.constant 0 : index
    %144 = vector.load %arg7[%c0_82, %c0_83] : memref<48x256xbf16, #tpu.memory_space<vmem>>, vector<16x256xbf16>
    tpu.vector_store %arg7[%c0_82, %c0_83], %143 {strides = array<i32>} : memref<48x256xbf16, #tpu.memory_space<vmem>>, vector<16x256xbf16>,
    %c9_i32 = arith.constant 9 : i32
    %145 = tpu.dynamic_rotate %135 by %c9_i32 dim 1 : vector<16x256xf32>, i32 -> vector<16x256xf32>
    %c9_i32_84 = arith.constant 9 : i32
    %146 = vector.broadcast %c9_i32_84 : i32 to vector<1x256xi32>
    %147 = arith.cmpi sge, %22, %146 : vector<1x256xi32>
    %cst_85 = arith.constant 0.000000e+00 : f32
    %148 = vector.shape_cast %147 : vector<1x256xi1> to vector<1x256xi1>
    %149 = vector.broadcast %148 : vector<1x256xi1> to vector<16x256xi1>
    %150 = vector.broadcast %cst_85 : f32 to vector<16x256xf32>
    %151 = arith.select %149, %145, %150 : vector<16x256xi1>, vector<16x256xf32>
    %152 = arith.truncf %151 : vector<16x256xf32> to vector<16x256xbf16>
    %c16_86 = arith.constant 16 : index
    %c0_87 = arith.constant 0 : index
    %153 = vector.load %arg7[%c16_86, %c0_87] : memref<48x256xbf16, #tpu.memory_space<vmem>>, vector<16x256xbf16>
    tpu.vector_store %arg7[%c16_86, %c0_87], %152 {strides = array<i32>} : memref<48x256xbf16, #tpu.memory_space<vmem>>, vector<16x256xbf16>,
    %154 = arith.truncf %135 : vector<16x256xf32> to vector<16x256xbf16>
    %c32_88 = arith.constant 32 : index
    %c0_89 = arith.constant 0 : index
    %155 = vector.load %arg7[%c32_88, %c0_89] : memref<48x256xbf16, #tpu.memory_space<vmem>>, vector<16x256xbf16>
    tpu.vector_store %arg7[%c32_88, %c0_89], %154 {strides = array<i32>} : memref<48x256xbf16, #tpu.memory_space<vmem>>, vector<16x256xbf16>,
    %c2 = arith.constant 2 : index
    %c0_90 = arith.constant 0 : index
    %c0_91 = arith.constant 0 : index
    %156 = vector.load %arg1[%c2, %c0_90, %c0_91] : memref<3x16x48xbf16, #tpu.memory_space<vmem>>, vector<1x16x48xbf16>
    %157 = vector.shape_cast %156 : vector<1x16x48xbf16> to vector<16x48xbf16>
    %c0_92 = arith.constant 0 : index
    %c0_93 = arith.constant 0 : index
    %158 = vector.load %arg7[%c0_92, %c0_93] : memref<48x256xbf16, #tpu.memory_space<vmem>>, vector<48x256xbf16>
    %cst_94 = arith.constant dense<0.000000e+00> : vector<16x256xf32>
    %159 = tpu.matmul %157, %158, %cst_94 {dimension_numbers = #tpu.dot_dimension_numbers<[1], [0], [0], [1], [0, 0, 1, 1], [], []>} : vector<16x48xbf16>, vector<48x256xbf16>, vector<16x256xf32> -> vector<16x256xf32>
    %c2_95 = arith.constant 2 : index
    %c0_96 = arith.constant 0 : index
    %c0_97 = arith.constant 0 : index
    %160 = vector.load %arg2[%c2_95, %c0_96, %c0_97] : memref<3x16x1xf32, #tpu.memory_space<vmem>>, vector<1x16x1xf32>
    %161 = vector.shape_cast %160 : vector<1x16x1xf32> to vector<16x1xf32>
    %162 = vector.broadcast %161 : vector<16x1xf32> to vector<16x256xf32>
    %163 = arith.addf %159, %162 : vector<16x256xf32>
    %cst_98 = arith.constant dense<0.000000e+00> : vector<16xf32>
    %164 = vector.multi_reduction <add>, %163, %cst_98 [1] : vector<16x256xf32> to vector<16xf32>
    %165 = vector.shape_cast %164 : vector<16xf32> to vector<16x1xf32>
    %cst_99 = arith.constant 3.906250e-03 : f32
    %166 = vector.broadcast %cst_99 : f32 to vector<16x1xf32>
    %167 = arith.mulf %165, %166 : vector<16x1xf32>
    %168 = vector.broadcast %167 : vector<16x1xf32> to vector<16x256xf32>
    %169 = arith.subf %163, %168 : vector<16x256xf32>
    %170 = arith.mulf %169, %169 : vector<16x256xf32>
    %cst_100 = arith.constant dense<0.000000e+00> : vector<16xf32>
    %171 = vector.multi_reduction <add>, %170, %cst_100 [1] : vector<16x256xf32> to vector<16xf32>
    %172 = vector.shape_cast %171 : vector<16xf32> to vector<16x1xf32>
    %cst_101 = arith.constant 3.906250e-03 : f32
    %173 = vector.broadcast %cst_101 : f32 to vector<16x1xf32>
    %174 = arith.mulf %172, %173 : vector<16x1xf32>
    %c2_102 = arith.constant 2 : index
    %c0_103 = arith.constant 0 : index
    %c0_104 = arith.constant 0 : index
    %175 = vector.load %arg3[%c2_102, %c0_103, %c0_104] : memref<3x16x1xf32, #tpu.memory_space<vmem>>, vector<1x16x1xf32>
    %176 = vector.shape_cast %175 : vector<1x16x1xf32> to vector<16x1xf32>
    %cst_105 = arith.constant 9.99999974E-6 : f32
    %177 = vector.broadcast %cst_105 : f32 to vector<16x1xf32>
    %178 = arith.addf %174, %177 : vector<16x1xf32>
    %179 = math.rsqrt %178 : vector<16x1xf32>
    %180 = arith.mulf %176, %179 : vector<16x1xf32>
    %181 = vector.broadcast %180 : vector<16x1xf32> to vector<16x256xf32>
    %182 = arith.mulf %169, %181 : vector<16x256xf32>
    %c2_106 = arith.constant 2 : index
    %c0_107 = arith.constant 0 : index
    %c0_108 = arith.constant 0 : index
    %183 = vector.load %arg4[%c2_106, %c0_107, %c0_108] : memref<3x16x1xf32, #tpu.memory_space<vmem>>, vector<1x16x1xf32>
    %184 = vector.shape_cast %183 : vector<1x16x1xf32> to vector<16x1xf32>
    %185 = vector.broadcast %184 : vector<16x1xf32> to vector<16x256xf32>
    %186 = arith.addf %182, %185 : vector<16x256xf32>
    %cst_109 = arith.constant 0.000000e+00 : f32
    %187 = vector.broadcast %cst_109 : f32 to vector<16x256xf32>
    %188 = arith.maximumf %186, %187 : vector<16x256xf32>
    %189 = arith.addf %135, %188 : vector<16x256xf32>
    %c0_110 = arith.constant 0 : index
    %c0_111 = arith.constant 0 : index
    %190 = vector.load %arg6[%c0_110, %c0_111] : memref<16x256xf32, #tpu.memory_space<vmem>>, vector<16x256xf32>
    tpu.vector_store %arg6[%c0_110, %c0_111], %189 {strides = array<i32>} : memref<16x256xf32, #tpu.memory_space<vmem>>, vector<16x256xf32>,
    %c0_112 = arith.constant 0 : index
    %c0_113 = arith.constant 0 : index
    %191 = vector.load %arg6[%c0_112, %c0_113] : memref<16x256xf32, #tpu.memory_space<vmem>>, vector<16x128xf32>
    %c0_114 = arith.constant 0 : index
    %c0_115 = arith.constant 0 : index
    %c0_116 = arith.constant 0 : index
    %192 = vector.load %arg5[%c0_114, %c0_115, %c0_116] : memref<2x16x128xf32, #tpu.memory_space<vmem>>, vector<1x16x128xf32>
    %193 = vector.shape_cast %192 : vector<1x16x128xf32> to vector<16x128xf32>
    %194 = vector.shape_cast %191 : vector<16x128xf32> to vector<1x16x128xf32>
    tpu.vector_store %arg5[%c0_114, %c0_115, %c0_116], %194 {strides = array<i32>} : memref<2x16x128xf32, #tpu.memory_space<vmem>>, vector<1x16x128xf32>,
    %c0_117 = arith.constant 0 : index
    %c128_118 = arith.constant 128 : index
    %195 = vector.load %arg6[%c0_117, %c128_118] : memref<16x256xf32, #tpu.memory_space<vmem>>, vector<16x128xf32>
    %c1_119 = arith.constant 1 : index
    %c0_120 = arith.constant 0 : index
    %c0_121 = arith.constant 0 : index
    %196 = vector.load %arg5[%c1_119, %c0_120, %c0_121] : memref<2x16x128xf32, #tpu.memory_space<vmem>>, vector<1x16x128xf32>
    %197 = vector.shape_cast %196 : vector<1x16x128xf32> to vector<16x128xf32>
    %198 = vector.shape_cast %195 : vector<16x128xf32> to vector<1x16x128xf32>
    tpu.vector_store %arg5[%c1_119, %c0_120, %c0_121], %198 {strides = array<i32>} : memref<2x16x128xf32, #tpu.memory_space<vmem>>, vector<1x16x128xf32>,
    return
  }
}

</mosaic_0001>

<llo_original>
// kernel: encoder_block_forward.1
$region0: #{encoder_block_forward.1}
  #allocation0 [shape = 'u32[]', space=smem, size = 0x4, offset = 0x4, fixed_abs, tag = 'smem constant byte address 0x4 - core index']
  #allocation1 [shape = 'u32[144,128]{1,0:T(1,128)}', space=vmem, size = 0x12000, scoped, tag = 'internal scratch']
  #allocation2 [shape = 'f32[16,256]{1,0:T(8,128)}', space=vmem, size = 0x4000, scoped, tag = 'scratch operand']
  #allocation3 [shape = 'bf16[48,256]{1,0:T(16,128)(2,1)}', space=vmem, size = 0x6000, scoped, tag = 'scratch operand']
  %s0 = inlined_call_operand.hbm [shape: f32[2,16,128], index: 0, kind: input, shape index: {}, may-alias: {0,5}]
  %s1 = inlined_call_operand.vmem [shape: bf16[3,16,48], index: 1, kind: input, shape index: {}]
  %s2 = inlined_call_operand.vmem [shape: f32[3,16,1], index: 2, kind: input, shape index: {}]
  %s3 = inlined_call_operand.vmem [shape: f32[3,16,1], index: 3, kind: input, shape index: {}]
  %s4 = inlined_call_operand.vmem [shape: f32[3,16,1], index: 4, kind: input, shape index: {}]
  %s5 = inlined_call_operand.hbm [shape: f32[2,16,128], index: 5, kind: output, shape index: {}, may-alias: {0,5}]
  %s6 = sld [smem:[#allocation0]]
  $region34: #{encoder_block_forward.1} parent=0
    _
  %s8 = ssub.s32 1, %s6
  %s9 = scalar_select 0, %s8, %s6
  $region1: #{encoder_block_forward.1} parent=0
    #allocation4 [shape = 'u8[16384]{0}', space=vmem, size = 0x4000, scoped, tag = 'input window, operand 0, single buffered']
    #allocation5 [shape = 's32[1]{0}', space=sflag, size = 0x4, scoped, tag = 'scoped memory for encoder_block_forward.1']
    #allocation6 [shape = 's32[1]{0}', space=sflag, size = 0x4, scoped, tag = 'scoped memory for encoder_block_forward.1']
    #allocation7 [shape = 'u8[16384]{0}', space=vmem, size = 0x4000, scoped, tag = 'output window, operand 0, single buffered']
    %10 = vsyncpa [#allocation5], 0
    %11 = vsyncpa [#allocation6], 0
    // Predicated region
    $region2: #{encoder_block_forward.1} parent=1 // pred_check
      _
    $region3: #{encoder_block_forward.1} parent=1 // pred_check_branch
      %13 = sbr.rel (0) target = $region5
    $region4: #{encoder_block_forward.1} parent=1 // pred_region
      %s15 = ssub.s32 512, 512
      %16 = vsyncadd [#allocation5], %s15
      %s17 = sshll.u32 [#allocation4], 4
      %s18 = int_to_ptr.vmem [resolvable:$true] %s17
      %23 = dma.hbm_to_vmem [thread:$0]  %s0, 512, %s18, [#allocation5], 128, 128, 8
    $region5: #{encoder_block_forward.1} parent=1 // pred_fallthru
      _
    // Predicated region
    $region6: #{encoder_block_forward.1} parent=1 // pred_check
      _
    $region7: #{encoder_block_forward.1} parent=1 // pred_check_branch
      %25 = sbr.rel (0) target = $region9
    $region8: #{encoder_block_forward.1} parent=1 // pred_region
      _
    $region9: #{encoder_block_forward.1} parent=1 // pred_fallthru
      _
    // Predicated region
    $region10: #{encoder_block_forward.1} parent=1 // pred_check
      _
    $region11: #{encoder_block_forward.1} parent=1 // pred_check_branch
      %27 = sbr.rel (0) target = $region13
    $region12: #{encoder_block_forward.1} parent=1 // pred_region
      _
    $region13: #{encoder_block_forward.1} parent=1 // pred_fallthru
      _
    // Predicated region
    $region14: #{encoder_block_forward.1} parent=1 // pred_check
      _
    $region15: #{encoder_block_forward.1} parent=1 // pred_check_branch
      %29 = sbr.rel (0) target = $region17
    $region16: #{encoder_block_forward.1} parent=1 // pred_region
      _
    $region17: #{encoder_block_forward.1} parent=1 // pred_fallthru
      _
    // Predicated region
    $region18: #{encoder_block_forward.1} parent=1 // pred_check
      _
    $region19: #{encoder_block_forward.1} parent=1 // pred_check_branch
      %31 = sbr.rel (0) target = $region21
    $region20: #{encoder_block_forward.1} parent=1 // pred_region
      _
    $region21: #{encoder_block_forward.1} parent=1 // pred_fallthru
      _
    // Predicated region
    $region22: #{encoder_block_forward.1} parent=1 // pred_check
      _
    $region23: #{encoder_block_forward.1} parent=1 // pred_check_branch
      %33 = sbr.rel (0) target = $region25
    $region24: #{encoder_block_forward.1} parent=1 // pred_region
      %34 = dma.done [#allocation5], 512
    $region25: #{encoder_block_forward.1} parent=1 // pred_fallthru
      _
    %v36 = vld [vmem:[#allocation4] sm:$0xff]
    %v37 = vld [vmem:[#allocation4 + $0x8] sm:$0xff]
    %38 = vst [vmem:[#allocation2] sm:$0xff] %v36
    %39 = vst [vmem:[#allocation2 + $0x10] sm:$0xff] %v37
    %s40 = scalar_lea.vmem [#allocation4], 16
    %v41 = vld [vmem:[%s40] sm:$0xff]
    %v42 = vld [vmem:[%s40 + $0x8] sm:$0xff]
    %43 = vst [vmem:[#allocation2 + $0x8] sm:$0xff] %v41
    %44 = vst [vmem:[#allocation2 + $0x18] sm:$0xff] %v42
    %v45 = vlaneseq
    %v46 = vand.u32 %v45, 127
    %v47 = vadd.s32 %v46, 128
    %vm48 = vcmp.lt.s32.totalorder %v46, 0
    %v49 = vsub.s32 0, %v46
    %v50 = vsel %vm48, %v49, %v46
    %v51 = vshrl.u32 %v50, 7
    %v52 = vand.u32 %v50, 127
    %v53 = vsub.s32 0, %v52
    %v54 = vsel %vm48, %v53, %v52
    %vm55 = vcmp.lt.s32.totalorder %v47, 0
    %v56 = vsub.s32 0, %v47
    %v57 = vsel %vm55, %v56, %v47
    %v58 = vshrl.u32 %v57, 7
    %v59 = vand.u32 %v57, 127
    %v60 = vsub.s32 0, %v59
    %v61 = vsel %vm55, %v60, %v59
    %vm62 = vcmp.ne.s32.totalorder %v54, 0
    %vm63 = vcmp.ne.s32.totalorder %v61, 0
    %vm64 = vcmp.lt.s32.totalorder %v54, 0
    %vm65 = vcmp.lt.s32.totalorder %v61, 0
    %vm66 = vmand %vm64, %vm62
    %vm67 = vmand %vm65, %vm63
    %v68 = vadd.s32 %v54, 128
    %v69 = vadd.s32 %v61, 128
    %v70 = vsel %vm66, %v68, %v54
    %v71 = vsel %vm67, %v69, %v61
    %v72 = vld [vmem:[#allocation2] sm:$0xff]
    %v73 = vld [vmem:[#allocation2 + $0x8] sm:$0xff]
    %v74 = vld [vmem:[#allocation2 + $0x10] sm:$0xff]
    %v75 = vld [vmem:[#allocation2 + $0x18] sm:$0xff]
    %76 = vrot.lane.b32.xlu0 %v72, 2
    %v77 = vpop.permute.xlu0 %76
    %78 = vrot.lane.b32.xlu0 %v74, 2
    %v79 = vpop.permute.xlu0 %78
    %80 = vrot.lane.b32.xlu0 %v73, 2
    %v81 = vpop.permute.xlu0 %80
    %82 = vrot.lane.b32.xlu0 %v75, 2
    %v83 = vpop.permute.xlu0 %82
    %vm84 = vcmp.lt.s32.totalorder %v46, 2
    %v85 = vsel %vm84, %v77, %v81
    %v86 = vsel %vm84, %v79, %v83
    %v87 = vsel %vm84, %v81, %v77
    %v88 = vsel %vm84, %v83, %v79
    %vm89 = vcmp.ge.s32.totalorder %v70, 2
    %vm90 = vcmp.ge.s32.totalorder %v71, 2
    %v91 = vsel %vm89, 1, 0
    %v92 = vsel %vm90, 1, 0
    %vm93 = vcmp.eq.s32.totalorder %v91, 1
    %vm94 = vcmp.eq.s32.totalorder %v92, 1
    %v95 = vsel %vm93, %v87, 0.0
    %v96 = vsel %vm94, %v85, 0.0
    %v97 = vsel %vm93, %v88, 0.0
    %v98 = vsel %vm94, %v86, 0.0
    %v99 = vpack.c.bf16 %v97, %v95
    %v100 = vpack.c.bf16 %v98, %v96
    %101 = vst [vmem:[#allocation3] sm:$0xff] %v99
    %102 = vst [vmem:[#allocation3 + $0x8] sm:$0xff] %v100
    %103 = vrot.lane.b32.xlu0 %v72, 1
    %v104 = vpop.permute.xlu0 %103
    %105 = vrot.lane.b32.xlu0 %v74, 1
    %v106 = vpop.permute.xlu0 %105
    %107 = vrot.lane.b32.xlu0 %v73, 1
    %v108 = vpop.permute.xlu0 %107
    %109 = vrot.lane.b32.xlu0 %v75, 1
    %v110 = vpop.permute.xlu0 %109
    %vm111 = vcmp.lt.s32.totalorder %v46, 1
    %v112 = vsel %vm111, %v104, %v108
    %v113 = vsel %vm111, %v106, %v110
    %v114 = vsel %vm111, %v108, %v104
    %v115 = vsel %vm111, %v110, %v106
    %vm116 = vcmp.ge.s32.totalorder %v70, 1
    %vm117 = vcmp.ge.s32.totalorder %v71, 1
    %v118 = vsel %vm116, 1, 0
    %v119 = vsel %vm117, 1, 0
    %vm120 = vcmp.eq.s32.totalorder %v118, 1
    %vm121 = vcmp.eq.s32.totalorder %v119, 1
    %v122 = vsel %vm120, %v114, 0.0
    %v123 = vsel %vm121, %v112, 0.0
    %v124 = vsel %vm120, %v115, 0.0
    %v125 = vsel %vm121, %v113, 0.0
    %v126 = vpack.c.bf16 %v124, %v122
    %v127 = vpack.c.bf16 %v125, %v123
    %128 = vst [vmem:[#allocation3 + $0x10] sm:$0xff] %v126
    %129 = vst [vmem:[#allocation3 + $0x18] sm:$0xff] %v127
    %v130 = vpack.c.bf16 %v74, %v72
    %v131 = vpack.c.bf16 %v75, %v73
    %132 = vst [vmem:[#allocation3 + $0x20] sm:$0xff] %v130
    %133 = vst [vmem:[#allocation3 + $0x28] sm:$0xff] %v131
    %v134 = vld [vmem:[%s1] sm:$0xf]
    %v135 = vld [vmem:[%s1 + $0x4] sm:$0xf]
    %v136 = vld [vmem:[#allocation3] sm:$0xff]
    %v137 = vld [vmem:[#allocation3 + $0x8] sm:$0xff]
    %v138 = vld [vmem:[#allocation3 + $0x10] sm:$0xff]
    %v139 = vld [vmem:[#allocation3 + $0x18] sm:$0xff]
    %v140 = vld [vmem:[#allocation3 + $0x20] sm:$0xff]
    %v141 = vld [vmem:[#allocation3 + $0x28] sm:$0xff]
    %v142 = vld [vmem:[%s2] sm:$0xff]
    %v143 = vld [vmem:[%s2 + $0x8] sm:$0xff]
    %145 = vset.pattern.permute.xlu0 0
    %146 = vperm.xlu0 %145, %v142
    %v147 = vpop.permute.xlu0 %146
    %150 = vset.pattern.permute.xlu0 0
    %151 = vperm.xlu0 %150, %v143
    %v152 = vpop.permute.xlu0 %151
    %v156 = vunpack.c.l.b16 %v134
    %v157 = vunpack.c.l.b16 %v135
    %v158 = vpack.c.b16 %v157, %v156
    %vm159 = vcmask 392192
    %v161 = vsel %vm159, %v158, 0
    %163 = vmatprep.subr.bf16.mxu0 %v137
    %164 = vmatpush1.bf16.msra.mxu0 %v136
    %165 = vmatprep.subr.bf16.mxu0 %v139
    %166 = vmatpush1.bf16.msra.mxu0 %v138
    %167 = vmatprep.subr.bf16.mxu0 %v141
    %168 = vmatpush1.bf16.msra.mxu0 %v140
    %169 = vmatprep.subr.bf16.mxu0 0
    %170 = vmatpush1.bf16.msra.mxu0 0
    %171 = vmatprep.subr.bf16.mxu0 0
    %172 = vmatpush1.bf16.msra.mxu0 0
    %173 = vmatprep.subr.bf16.mxu0 0
    %174 = vmatpush1.bf16.msra.mxu0 0
    %175 = vmatprep.subr.bf16.mxu0 0
    %176 = vmatpush1.bf16.msra.mxu0 0
    %177 = vmatprep.subr.bf16.mxu0 0
    %178 = vmatpush1.bf16.msra.mxu0 0
    %179 = vmatprep.subr.bf16.mxu0 0
    %180 = vmatpush1.bf16.msra.mxu0 0
    %181 = vmatprep.subr.bf16.mxu0 0
    %182 = vmatpush1.bf16.msra.mxu0 0
    %183 = vmatprep.subr.bf16.mxu0 0
    %184 = vmatpush1.bf16.msra.mxu0 0
    %185 = vmatprep.subr.bf16.mxu0 0
    %186 = vmatpush1.bf16.msra.mxu0 0
    %187 = vmatprep.subr.bf16.mxu0 0
    %188 = vmatpush1.bf16.msra.mxu0 0
    %189 = vmatprep.subr.bf16.mxu0 0
    %190 = vmatpush1.bf16.msra.mxu0 0
    %191 = vmatprep.subr.bf16.mxu0 0
    %192 = vmatpush1.bf16.msra.mxu0 0
    %193 = vmatprep.subr.bf16.mxu0 0
    %194 = vmatpush1.bf16.msra.mxu0 0
    %195 = vmatprep.mubr.bf16.mxu0 0
    %196 = vmatmul.mubr.bf16.gmra.mrb[0].mxu0 %v161
    %v197 = vpop.f32.mrb[0].mxu0
    %v198 = vadd.f32 %v147, %v197
    %v199 = vpop.f32.mrb[0].mxu0
    %v200 = vadd.f32 %v147, %v199
    %v201 = vpop.f32.mrb[0].mxu0
    %v202 = vadd.f32 %v152, %v201
    %v203 = vpop.f32.mrb[0].mxu0
    %v204 = vadd.f32 %v152, %v203
    %205 = vdwg.mxu0
    %v206 = vadd.f32 %v198, %v200
    %207 = vadd.xlane.f32.xlu0 %v206
    %v208 = vpop.xlane.xlu0 %207
    %v209 = vadd.f32 %v202, %v204
    %210 = vadd.xlane.f32.xlu0 %v209
    %v211 = vpop.xlane.xlu0 %210
    %v212 = vmul.f32 %v208, 0.00390625
    %v213 = vmul.f32 %v211, 0.00390625
    %v214 = vsub.f32 %v198, %v212
    %v215 = vsub.f32 %v200, %v212
    %v216 = vsub.f32 %v202, %v213
    %v217 = vsub.f32 %v204, %v213
    %v218 = vmul.f32 %v214, %v214
    %v219 = vmul.f32 %v215, %v215
    %v220 = vmul.f32 %v216, %v216
    %v221 = vmul.f32 %v217, %v217
    %v222 = vadd.f32 %v218, %v219
    %223 = vadd.xlane.f32.xlu0 %v222
    %v224 = vpop.xlane.xlu0 %223
    %v225 = vadd.f32 %v220, %v221
    %226 = vadd.xlane.f32.xlu0 %v225
    %v227 = vpop.xlane.xlu0 %226
    %v228 = vmul.f32 %v224, 0.00390625
    %v229 = vmul.f32 %v227, 0.00390625
    %v230 = vld [vmem:[%s3] sm:$0xff]
    %v231 = vld [vmem:[%s3 + $0x8] sm:$0xff]
    %v232 = vadd.f32 %v228, 1e-05
    %v233 = vadd.f32 %v229, 1e-05
    %v234 = vrsqrt.pop %v232
    %v235 = vrsqrt.pop %v233
    %v236 = vmul.f32 %v230, %v234
    %v237 = vmul.f32 %v231, %v235
    %239 = vset.pattern.permute.xlu0 0
    %240 = vperm.xlu0 %239, %v236
    %v241 = vpop.permute.xlu0 %240
    %244 = vset.pattern.permute.xlu0 0
    %245 = vperm.xlu0 %244, %v237
    %v246 = vpop.permute.xlu0 %245
    %v248 = vmul.f32 %v214, %v241
    %v249 = vmul.f32 %v215, %v241
    %v250 = vmul.f32 %v216, %v246
    %v251 = vmul.f32 %v217, %v246
    %v252 = vld [vmem:[%s4] sm:$0xff]
    %v253 = vld [vmem:[%s4 + $0x8] sm:$0xff]
    %255 = vset.pattern.permute.xlu0 0
    %256 = vperm.xlu0 %255, %v252
    %v257 = vpop.permute.xlu0 %256
    %260 = vset.pattern.permute.xlu0 0
    %261 = vperm.xlu0 %260, %v253
    %v262 = vpop.permute.xlu0 %261
    %v264 = vadd.f32 %v248, %v257
    %v265 = vadd.f32 %v249, %v257
    %v266 = vadd.f32 %v250, %v262
    %v267 = vadd.f32 %v251, %v262
    %v268 = vmax.f32 %v264, 0.0
    %v269 = vmax.f32 %v265, 0.0
    %v270 = vmax.f32 %v266, 0.0
    %v271 = vmax.f32 %v267, 0.0
    %v272 = vadd.f32 %v72, %v268
    %v273 = vadd.f32 %v73, %v269
    %v274 = vadd.f32 %v74, %v270
    %v275 = vadd.f32 %v75, %v271
    %276 = vst [vmem:[#allocation2] sm:$0xff] %v272
    %277 = vst [vmem:[#allocation2 + $0x8] sm:$0xff] %v273
    %278 = vst [vmem:[#allocation2 + $0x10] sm:$0xff] %v274
    %279 = vst [vmem:[#allocation2 + $0x18] sm:$0xff] %v275
    %v280 = vld [vmem:[#allocation2] sm:$0xff]
    %v281 = vld [vmem:[#allocation2 + $0x8] sm:$0xff]
    %v282 = vld [vmem:[#allocation2 + $0x10] sm:$0xff]
    %v283 = vld [vmem:[#allocation2 + $0x18] sm:$0xff]
    %284 = vrot.lane.b32.xlu0 %v280, 6
    %v285 = vpop.permute.xlu0 %284
    %286 = vrot.lane.b32.xlu0 %v282, 6
    %v287 = vpop.permute.xlu0 %286
    %288 = vrot.lane.b32.xlu0 %v281, 6
    %v289 = vpop.permute.xlu0 %288
    %290 = vrot.lane.b32.xlu0 %v283, 6
    %v291 = vpop.permute.xlu0 %290
    %vm292 = vcmp.lt.s32.totalorder %v46, 6
    %v293 = vsel %vm292, %v285, %v289
    %v294 = vsel %vm292, %v287, %v291
    %v295 = vsel %vm292, %v289, %v285
    %v296 = vsel %vm292, %v291, %v287
    %vm297 = vcmp.ge.s32.totalorder %v70, 6
    %vm298 = vcmp.ge.s32.totalorder %v71, 6
    %v299 = vsel %vm297, 1, 0
    %v300 = vsel %vm298, 1, 0
    %vm301 = vcmp.eq.s32.totalorder %v299, 1
    %vm302 = vcmp.eq.s32.totalorder %v300, 1
    %v303 = vsel %vm301, %v295, 0.0
    %v304 = vsel %vm302, %v293, 0.0
    %v305 = vsel %vm301, %v296, 0.0
    %v306 = vsel %vm302, %v294, 0.0
    %v307 = vpack.c.bf16 %v305, %v303
    %v308 = vpack.c.bf16 %v306, %v304
    %309 = vst [vmem:[#allocation3] sm:$0xff] %v307
    %310 = vst [vmem:[#allocation3 + $0x8] sm:$0xff] %v308
    %311 = vrot.lane.b32.xlu0 %v280, 3
    %v312 = vpop.permute.xlu0 %311
    %313 = vrot.lane.b32.xlu0 %v282, 3
    %v314 = vpop.permute.xlu0 %313
    %315 = vrot.lane.b32.xlu0 %v281, 3
    %v316 = vpop.permute.xlu0 %315
    %317 = vrot.lane.b32.xlu0 %v283, 3
    %v318 = vpop.permute.xlu0 %317
    %vm319 = vcmp.lt.s32.totalorder %v46, 3
    %v320 = vsel %vm319, %v312, %v316
    %v321 = vsel %vm319, %v314, %v318
    %v322 = vsel %vm319, %v316, %v312
    %v323 = vsel %vm319, %v318, %v314
    %vm324 = vcmp.ge.s32.totalorder %v70, 3
    %vm325 = vcmp.ge.s32.totalorder %v71, 3
    %v326 = vsel %vm324, 1, 0
    %v327 = vsel %vm325, 1, 0
    %vm328 = vcmp.eq.s32.totalorder %v326, 1
    %vm329 = vcmp.eq.s32.totalorder %v327, 1
    %v330 = vsel %vm328, %v322, 0.0
    %v331 = vsel %vm329, %v320, 0.0
    %v332 = vsel %vm328, %v323, 0.0
    %v333 = vsel %vm329, %v321, 0.0
    %v334 = vpack.c.bf16 %v332, %v330
    %v335 = vpack.c.bf16 %v333, %v331
    %336 = vst [vmem:[#allocation3 + $0x10] sm:$0xff] %v334
    %337 = vst [vmem:[#allocation3 + $0x18] sm:$0xff] %v335
    %v338 = vpack.c.bf16 %v282, %v280
    %v339 = vpack.c.bf16 %v283, %v281
    %340 = vst [vmem:[#allocation3 + $0x20] sm:$0xff] %v338
    %341 = vst [vmem:[#allocation3 + $0x28] sm:$0xff] %v339
    %s342 = scalar_lea.vmem %s1, 8
    %v343 = vld [vmem:[%s342] sm:$0xf]
    %v344 = vld [vmem:[%s342 + $0x4] sm:$0xf]
    %v345 = vld [vmem:[#allocation3] sm:$0xff]
    %v346 = vld [vmem:[#allocation3 + $0x8] sm:$0xff]
    %v347 = vld [vmem:[#allocation3 + $0x10] sm:$0xff]
    %v348 = vld [vmem:[#allocation3 + $0x18] sm:$0xff]
    %v349 = vld [vmem:[#allocation3 + $0x20] sm:$0xff]
    %v350 = vld [vmem:[#allocation3 + $0x28] sm:$0xff]
    %s351 = scalar_lea.vmem %s2, 16
    %v352 = vld [vmem:[%s351] sm:$0xff]
    %v353 = vld [vmem:[%s351 + $0x8] sm:$0xff]
    %355 = vset.pattern.permute.xlu0 0
    %356 = vperm.xlu0 %355, %v352
    %v357 = vpop.permute.xlu0 %356
    %360 = vset.pattern.permute.xlu0 0
    %361 = vperm.xlu0 %360, %v353
    %v362 = vpop.permute.xlu0 %361
    %v366 = vunpack.c.l.b16 %v343
    %v367 = vunpack.c.l.b16 %v344
    %v368 = vpack.c.b16 %v367, %v366
    %v370 = vsel %vm159, %v368, 0
    %372 = vmatprep.subr.bf16.mxu0 %v346
    %373 = vmatpush1.bf16.msra.mxu0 %v345
    %374 = vmatprep.subr.bf16.mxu0 %v348
    %375 = vmatpush1.bf16.msra.mxu0 %v347
    %376 = vmatprep.subr.bf16.mxu0 %v350
    %377 = vmatpush1.bf16.msra.mxu0 %v349
    %378 = vmatprep.subr.bf16.mxu0 0
    %379 = vmatpush1.bf16.msra.mxu0 0
    %380 = vmatprep.subr.bf16.mxu0 0
    %381 = vmatpush1.bf16.msra.mxu0 0
    %382 = vmatprep.subr.bf16.mxu0 0
    %383 = vmatpush1.bf16.msra.mxu0 0
    %384 = vmatprep.subr.bf16.mxu0 0
    %385 = vmatpush1.bf16.msra.mxu0 0
    %386 = vmatprep.subr.bf16.mxu0 0
    %387 = vmatpush1.bf16.msra.mxu0 0
    %388 = vmatprep.subr.bf16.mxu0 0
    %389 = vmatpush1.bf16.msra.mxu0 0
    %390 = vmatprep.subr.bf16.mxu0 0
    %391 = vmatpush1.bf16.msra.mxu0 0
    %392 = vmatprep.subr.bf16.mxu0 0
    %393 = vmatpush1.bf16.msra.mxu0 0
    %394 = vmatprep.subr.bf16.mxu0 0
    %395 = vmatpush1.bf16.msra.mxu0 0
    %396 = vmatprep.subr.bf16.mxu0 0
    %397 = vmatpush1.bf16.msra.mxu0 0
    %398 = vmatprep.subr.bf16.mxu0 0
    %399 = vmatpush1.bf16.msra.mxu0 0
    %400 = vmatprep.subr.bf16.mxu0 0
    %401 = vmatpush1.bf16.msra.mxu0 0
    %402 = vmatprep.subr.bf16.mxu0 0
    %403 = vmatpush1.bf16.msra.mxu0 0
    %404 = vmatprep.mubr.bf16.mxu0 0
    %405 = vmatmul.mubr.bf16.gmra.mrb[0].mxu0 %v370
    %v406 = vpop.f32.mrb[0].mxu0
    %v407 = vadd.f32 %v357, %v406
    %v408 = vpop.f32.mrb[0].mxu0
    %v409 = vadd.f32 %v357, %v408
    %v410 = vpop.f32.mrb[0].mxu0
    %v411 = vadd.f32 %v362, %v410
    %v412 = vpop.f32.mrb[0].mxu0
    %v413 = vadd.f32 %v362, %v412
    %414 = vdwg.mxu0
    %v415 = vadd.f32 %v407, %v409
    %416 = vadd.xlane.f32.xlu0 %v415
    %v417 = vpop.xlane.xlu0 %416
    %v418 = vadd.f32 %v411, %v413
    %419 = vadd.xlane.f32.xlu0 %v418
    %v420 = vpop.xlane.xlu0 %419
    %v421 = vmul.f32 %v417, 0.00390625
    %v422 = vmul.f32 %v420, 0.00390625
    %v423 = vsub.f32 %v407, %v421
    %v424 = vsub.f32 %v409, %v421
    %v425 = vsub.f32 %v411, %v422
    %v426 = vsub.f32 %v413, %v422
    %v427 = vmul.f32 %v423, %v423
    %v428 = vmul.f32 %v424, %v424
    %v429 = vmul.f32 %v425, %v425
    %v430 = vmul.f32 %v426, %v426
    %v431 = vadd.f32 %v427, %v428
    %432 = vadd.xlane.f32.xlu0 %v431
    %v433 = vpop.xlane.xlu0 %432
    %v434 = vadd.f32 %v429, %v430
    %435 = vadd.xlane.f32.xlu0 %v434
    %v436 = vpop.xlane.xlu0 %435
    %v437 = vmul.f32 %v433, 0.00390625
    %v438 = vmul.f32 %v436, 0.00390625
    %s439 = scalar_lea.vmem %s3, 16
    %v440 = vld [vmem:[%s439] sm:$0xff]
    %v441 = vld [vmem:[%s439 + $0x8] sm:$0xff]
    %v442 = vadd.f32 %v437, 1e-05
    %v443 = vadd.f32 %v438, 1e-05
    %v444 = vrsqrt.pop %v442
    %v445 = vrsqrt.pop %v443
    %v446 = vmul.f32 %v440, %v444
    %v447 = vmul.f32 %v441, %v445
    %449 = vset.pattern.permute.xlu0 0
    %450 = vperm.xlu0 %449, %v446
    %v451 = vpop.permute.xlu0 %450
    %454 = vset.pattern.permute.xlu0 0
    %455 = vperm.xlu0 %454, %v447
    %v456 = vpop.permute.xlu0 %455
    %v458 = vmul.f32 %v423, %v451
    %v459 = vmul.f32 %v424, %v451
    %v460 = vmul.f32 %v425, %v456
    %v461 = vmul.f32 %v426, %v456
    %s462 = scalar_lea.vmem %s4, 16
    %v463 = vld [vmem:[%s462] sm:$0xff]
    %v464 = vld [vmem:[%s462 + $0x8] sm:$0xff]
    %466 = vset.pattern.permute.xlu0 0
    %467 = vperm.xlu0 %466, %v463
    %v468 = vpop.permute.xlu0 %467
    %471 = vset.pattern.permute.xlu0 0
    %472 = vperm.xlu0 %471, %v464
    %v473 = vpop.permute.xlu0 %472
    %v475 = vadd.f32 %v458, %v468
    %v476 = vadd.f32 %v459, %v468
    %v477 = vadd.f32 %v460, %v473
    %v478 = vadd.f32 %v461, %v473
    %v479 = vmax.f32 %v475, 0.0
    %v480 = vmax.f32 %v476, 0.0
    %v481 = vmax.f32 %v477, 0.0
    %v482 = vmax.f32 %v478, 0.0
    %v483 = vadd.f32 %v280, %v479
    %v484 = vadd.f32 %v281, %v480
    %v485 = vadd.f32 %v282, %v481
    %v486 = vadd.f32 %v283, %v482
    %487 = vst [vmem:[#allocation2] sm:$0xff] %v483
    %488 = vst [vmem:[#allocation2 + $0x8] sm:$0xff] %v484
    %489 = vst [vmem:[#allocation2 + $0x10] sm:$0xff] %v485
    %490 = vst [vmem:[#allocation2 + $0x18] sm:$0xff] %v486
    %v491 = vld [vmem:[#allocation2] sm:$0xff]
    %v492 = vld [vmem:[#allocation2 + $0x8] sm:$0xff]
    %v493 = vld [vmem:[#allocation2 + $0x10] sm:$0xff]
    %v494 = vld [vmem:[#allocation2 + $0x18] sm:$0xff]
    %495 = vrot.lane.b32.xlu0 %v491, 18
    %v496 = vpop.permute.xlu0 %495
    %497 = vrot.lane.b32.xlu0 %v493, 18
    %v498 = vpop.permute.xlu0 %497
    %499 = vrot.lane.b32.xlu0 %v492, 18
    %v500 = vpop.permute.xlu0 %499
    %501 = vrot.lane.b32.xlu0 %v494, 18
    %v502 = vpop.permute.xlu0 %501
    %vm503 = vcmp.lt.s32.totalorder %v46, 18
    %v504 = vsel %vm503, %v496, %v500
    %v505 = vsel %vm503, %v498, %v502
    %v506 = vsel %vm503, %v500, %v496
    %v507 = vsel %vm503, %v502, %v498
    %vm508 = vcmp.ge.s32.totalorder %v70, 18
    %vm509 = vcmp.ge.s32.totalorder %v71, 18
    %v510 = vsel %vm508, 1, 0
    %v511 = vsel %vm509, 1, 0
    %vm512 = vcmp.eq.s32.totalorder %v510, 1
    %vm513 = vcmp.eq.s32.totalorder %v511, 1
    %v514 = vsel %vm512, %v506, 0.0
    %v515 = vsel %vm513, %v504, 0.0
    %v516 = vsel %vm512, %v507, 0.0
    %v517 = vsel %vm513, %v505, 0.0
    %v518 = vpack.c.bf16 %v516, %v514
    %v519 = vpack.c.bf16 %v517, %v515
    %520 = vst [vmem:[#allocation3] sm:$0xff] %v518
    %521 = vst [vmem:[#allocation3 + $0x8] sm:$0xff] %v519
    %522 = vrot.lane.b32.xlu0 %v491, 9
    %v523 = vpop.permute.xlu0 %522
    %524 = vrot.lane.b32.xlu0 %v493, 9
    %v525 = vpop.permute.xlu0 %524
    %526 = vrot.lane.b32.xlu0 %v492, 9
    %v527 = vpop.permute.xlu0 %526
    %528 = vrot.lane.b32.xlu0 %v494, 9
    %v529 = vpop.permute.xlu0 %528
    %vm530 = vcmp.lt.s32.totalorder %v46, 9
    %v531 = vsel %vm530, %v523, %v527
    %v532 = vsel %vm530, %v525, %v529
    %v533 = vsel %vm530, %v527, %v523
    %v534 = vsel %vm530, %v529, %v525
    %vm535 = vcmp.ge.s32.totalorder %v70, 9
    %vm536 = vcmp.ge.s32.totalorder %v71, 9
    %v537 = vsel %vm535, 1, 0
    %v538 = vsel %vm536, 1, 0
    %vm539 = vcmp.eq.s32.totalorder %v537, 1
    %vm540 = vcmp.eq.s32.totalorder %v538, 1
    %v541 = vsel %vm539, %v533, 0.0
    %v542 = vsel %vm540, %v531, 0.0
    %v543 = vsel %vm539, %v534, 0.0
    %v544 = vsel %vm540, %v532, 0.0
    %v545 = vpack.c.bf16 %v543, %v541
    %v546 = vpack.c.bf16 %v544, %v542
    %547 = vst [vmem:[#allocation3 + $0x10] sm:$0xff] %v545
    %548 = vst [vmem:[#allocation3 + $0x18] sm:$0xff] %v546
    %v549 = vpack.c.bf16 %v493, %v491
    %v550 = vpack.c.bf16 %v494, %v492
    %551 = vst [vmem:[#allocation3 + $0x20] sm:$0xff] %v549
    %552 = vst [vmem:[#allocation3 + $0x28] sm:$0xff] %v550
    %s553 = scalar_lea.vmem %s1, 16
    %v554 = vld [vmem:[%s553] sm:$0xf]
    %v555 = vld [vmem:[%s553 + $0x4] sm:$0xf]
    %v556 = vld [vmem:[#allocation3] sm:$0xff]
    %v557 = vld [vmem:[#allocation3 + $0x8] sm:$0xff]
    %v558 = vld [vmem:[#allocation3 + $0x10] sm:$0xff]
    %v559 = vld [vmem:[#allocation3 + $0x18] sm:$0xff]
    %v560 = vld [vmem:[#allocation3 + $0x20] sm:$0xff]
    %v561 = vld [vmem:[#allocation3 + $0x28] sm:$0xff]
    %s562 = scalar_lea.vmem %s2, 32
    %v563 = vld [vmem:[%s562] sm:$0xff]
    %v564 = vld [vmem:[%s562 + $0x8] sm:$0xff]
    %566 = vset.pattern.permute.xlu0 0
    %567 = vperm.xlu0 %566, %v563
    %v568 = vpop.permute.xlu0 %567
    %571 = vset.pattern.permute.xlu0 0
    %572 = vperm.xlu0 %571, %v564
    %v573 = vpop.permute.xlu0 %572
    %v577 = vunpack.c.l.b16 %v554
    %v578 = vunpack.c.l.b16 %v555
    %v579 = vpack.c.b16 %v578, %v577
    %v581 = vsel %vm159, %v579, 0
    %583 = vmatprep.subr.bf16.mxu0 %v557
    %584 = vmatpush1.bf16.msra.mxu0 %v556
    %585 = vmatprep.subr.bf16.mxu0 %v559
    %586 = vmatpush1.bf16.msra.mxu0 %v558
    %587 = vmatprep.subr.bf16.mxu0 %v561
    %588 = vmatpush1.bf16.msra.mxu0 %v560
    %589 = vmatprep.subr.bf16.mxu0 0
    %590 = vmatpush1.bf16.msra.mxu0 0
    %591 = vmatprep.subr.bf16.mxu0 0
    %592 = vmatpush1.bf16.msra.mxu0 0
    %593 = vmatprep.subr.bf16.mxu0 0
    %594 = vmatpush1.bf16.msra.mxu0 0
    %595 = vmatprep.subr.bf16.mxu0 0
    %596 = vmatpush1.bf16.msra.mxu0 0
    %597 = vmatprep.subr.bf16.mxu0 0
    %598 = vmatpush1.bf16.msra.mxu0 0
    %599 = vmatprep.subr.bf16.mxu0 0
    %600 = vmatpush1.bf16.msra.mxu0 0
    %601 = vmatprep.subr.bf16.mxu0 0
    %602 = vmatpush1.bf16.msra.mxu0 0
    %603 = vmatprep.subr.bf16.mxu0 0
    %604 = vmatpush1.bf16.msra.mxu0 0
    %605 = vmatprep.subr.bf16.mxu0 0
    %606 = vmatpush1.bf16.msra.mxu0 0
    %607 = vmatprep.subr.bf16.mxu0 0
    %608 = vmatpush1.bf16.msra.mxu0 0
    %609 = vmatprep.subr.bf16.mxu0 0
    %610 = vmatpush1.bf16.msra.mxu0 0
    %611 = vmatprep.subr.bf16.mxu0 0
    %612 = vmatpush1.bf16.msra.mxu0 0
    %613 = vmatprep.subr.bf16.mxu0 0
    %614 = vmatpush1.bf16.msra.mxu0 0
    %615 = vmatprep.mubr.bf16.mxu0 0
    %616 = vmatmul.mubr.bf16.gmra.mrb[0].mxu0 %v581
    %v617 = vpop.f32.mrb[0].mxu0
    %v618 = vadd.f32 %v568, %v617
    %v619 = vpop.f32.mrb[0].mxu0
    %v620 = vadd.f32 %v568, %v619
    %v621 = vpop.f32.mrb[0].mxu0
    %v622 = vadd.f32 %v573, %v621
    %v623 = vpop.f32.mrb[0].mxu0
    %v624 = vadd.f32 %v573, %v623
    %625 = vdwg.mxu0
    %v626 = vadd.f32 %v618, %v620
    %627 = vadd.xlane.f32.xlu0 %v626
    %v628 = vpop.xlane.xlu0 %627
    %v629 = vadd.f32 %v622, %v624
    %630 = vadd.xlane.f32.xlu0 %v629
    %v631 = vpop.xlane.xlu0 %630
    %v632 = vmul.f32 %v628, 0.00390625
    %v633 = vmul.f32 %v631, 0.00390625
    %v634 = vsub.f32 %v618, %v632
    %v635 = vsub.f32 %v620, %v632
    %v636 = vsub.f32 %v622, %v633
    %v637 = vsub.f32 %v624, %v633
    %v638 = vmul.f32 %v634, %v634
    %v639 = vmul.f32 %v635, %v635
    %v640 = vmul.f32 %v636, %v636
    %v641 = vmul.f32 %v637, %v637
    %v642 = vadd.f32 %v638, %v639
    %643 = vadd.xlane.f32.xlu0 %v642
    %v644 = vpop.xlane.xlu0 %643
    %v645 = vadd.f32 %v640, %v641
    %646 = vadd.xlane.f32.xlu0 %v645
    %v647 = vpop.xlane.xlu0 %646
    %v648 = vmul.f32 %v644, 0.00390625
    %v649 = vmul.f32 %v647, 0.00390625
    %s650 = scalar_lea.vmem %s3, 32
    %v651 = vld [vmem:[%s650] sm:$0xff]
    %v652 = vld [vmem:[%s650 + $0x8] sm:$0xff]
    %v653 = vadd.f32 %v648, 1e-05
    %v654 = vadd.f32 %v649, 1e-05
    %v655 = vrsqrt.pop %v653
    %v656 = vrsqrt.pop %v654
    %v657 = vmul.f32 %v651, %v655
    %v658 = vmul.f32 %v652, %v656
    %660 = vset.pattern.permute.xlu0 0
    %661 = vperm.xlu0 %660, %v657
    %v662 = vpop.permute.xlu0 %661
    %665 = vset.pattern.permute.xlu0 0
    %666 = vperm.xlu0 %665, %v658
    %v667 = vpop.permute.xlu0 %666
    %v669 = vmul.f32 %v634, %v662
    %v670 = vmul.f32 %v635, %v662
    %v671 = vmul.f32 %v636, %v667
    %v672 = vmul.f32 %v637, %v667
    %s673 = scalar_lea.vmem %s4, 32
    %v674 = vld [vmem:[%s673] sm:$0xff]
    %v675 = vld [vmem:[%s673 + $0x8] sm:$0xff]
    %677 = vset.pattern.permute.xlu0 0
    %678 = vperm.xlu0 %677, %v674
    %v679 = vpop.permute.xlu0 %678
    %682 = vset.pattern.permute.xlu0 0
    %683 = vperm.xlu0 %682, %v675
    %v684 = vpop.permute.xlu0 %683
    %v686 = vadd.f32 %v669, %v679
    %v687 = vadd.f32 %v670, %v679
    %v688 = vadd.f32 %v671, %v684
    %v689 = vadd.f32 %v672, %v684
    %v690 = vmax.f32 %v686, 0.0
    %v691 = vmax.f32 %v687, 0.0
    %v692 = vmax.f32 %v688, 0.0
    %v693 = vmax.f32 %v689, 0.0
    %v694 = vadd.f32 %v491, %v690
    %v695 = vadd.f32 %v492, %v691
    %v696 = vadd.f32 %v493, %v692
    %v697 = vadd.f32 %v494, %v693
    %698 = vst [vmem:[#allocation2] sm:$0xff] %v694
    %699 = vst [vmem:[#allocation2 + $0x8] sm:$0xff] %v695
    %700 = vst [vmem:[#allocation2 + $0x10] sm:$0xff] %v696
    %701 = vst [vmem:[#allocation2 + $0x18] sm:$0xff] %v697
    %v702 = vld [vmem:[#allocation2] sm:$0xff]
    %v703 = vld [vmem:[#allocation2 + $0x10] sm:$0xff]
    %704 = vst [vmem:[#allocation7] sm:$0xff] %v702
    %705 = vst [vmem:[#allocation7 + $0x8] sm:$0xff] %v703
    %v706 = vld [vmem:[#allocation2 + $0x8] sm:$0xff]
    %v707 = vld [vmem:[#allocation2 + $0x18] sm:$0xff]
    %s708 = scalar_lea.vmem [#allocation7], 16
    %709 = vst [vmem:[%s708] sm:$0xff] %v706
    %710 = vst [vmem:[%s708 + $0x8] sm:$0xff] %v707
    // Predicated region
    $region26: #{encoder_block_forward.1} parent=1 // pred_check
      _
    $region27: #{encoder_block_forward.1} parent=1 // pred_check_branch
      %712 = sbr.rel (0) target = $region29
    $region28: #{encoder_block_forward.1} parent=1 // pred_region
      %s714 = ssub.s32 512, 512
      %715 = vsyncadd [#allocation6], %s714
      %s716 = sshll.u32 [#allocation7], 4
      %s717 = int_to_ptr.vmem [resolvable:$true] %s716
      %722 = dma.vmem_to_hbm [thread:$0]  %s717, 512, %s5, [#allocation6], 128, 128, 8
    $region29: #{encoder_block_forward.1} parent=1 // pred_fallthru
      _
    // Predicated region
    $region30: #{encoder_block_forward.1} parent=1 // pred_check
      _
    $region31: #{encoder_block_forward.1} parent=1 // pred_check_branch
      %724 = sbr.rel (0) target = $region33
    $region32: #{encoder_block_forward.1} parent=1 // pred_region
      %725 = dma.done [#allocation6], 512
    $region33: #{encoder_block_forward.1} parent=1 // pred_fallthru
      _
    %726 = vsyncpa [#allocation5], 1
    %727 = vsyncpa [#allocation6], 1

</llo_original>
